<compile_context>
chip_gen: v7x
topology: tpu7x:2x2x1
jax: 0.10.0
libtpu: 0.0.40
codegen_flags: <defaults>
</compile_context>

<pallas_src>
import functools

import jax
import jax.numpy as jnp
from jax.experimental import pallas as pl
from jax.experimental.pallas import tpu as pltpu


def _round_up(x, m):
    return (x + m - 1) // m * m


# ----------------------------- Pallas kernel ------------------------------
def _alpha_predictor_kernel(
    xcat_ref,   # (1, TR, K)      K = 10*Cin : [im2col patches | shortcut taps]
    w_ref,      # (K, Cpad)       BN-folded fused conv weight (zero-padded Cout)
    b_ref,      # (1, Cpad)       combined BN bias
    wfc_ref,    # (Cpad, 128)     FC weight, only column 0 is real
    bfc_ref,    # (1, 128)        FC bias, only column 0 is real
    out_ref,    # (1, 8, 128)     lane-dense output slab for this sample
    acc_ref,    # (1, Cpad)       VMEM scratch: per-sample channel sum
    *,
    hw,         # Ho*Wo (true number of output pixels per sample)
    tr,         # row-tile size
):
    r = pl.program_id(1)

    @pl.when(r == 0)
    def _():
        acc_ref[...] = jnp.zeros_like(acc_ref)

    # fused (main conv + shortcut conv) as one MXU pass, BN folded into W/b
    x = xcat_ref[0]                                          # (TR, K)
    z = jnp.dot(x, w_ref[...], preferred_element_type=jnp.float32)
    z = z + b_ref[...]
    feat = jnp.maximum(z, 0.0)                               # (TR, Cpad)

    # mask rows past the real Ho*Wo (row padding from tiling)
    row = jax.lax.broadcasted_iota(jnp.int32, (tr, 1), 0) + r * tr
    feat = jnp.where(row < hw, feat, 0.0)

    # global-average-pool accumulation (sum now, divide at the end)
    acc_ref[...] += jnp.sum(feat, axis=0, keepdims=True)     # (1, Cpad)

    @pl.when(r == pl.num_programs(1) - 1)
    def _():
        pooled = acc_ref[...] * (1.0 / float(hw))            # (1, Cpad)
        logits = jnp.dot(pooled, wfc_ref[...],
                         preferred_element_type=jnp.float32) + bfc_ref[...]
        sig = 1.0 / (1.0 + jnp.exp(-logits))                 # (1, 128)
        out_ref[0] = jnp.broadcast_to(sig, (8, 128))         # lane-dense store


# ------------------------------- Wrapper ----------------------------------
def _im2col_3x3_s2(x_nhwc):
    """im2col for 3x3 conv, stride 2, pad 1. Column order = (kh, kw, cin)."""
    n, h, w, c = x_nhwc.shape
    ho = (h + 2 - 3) // 2 + 1
    wo = (w + 2 - 3) // 2 + 1
    xp = jnp.pad(x_nhwc, ((0, 0), (1, 1), (1, 1), (0, 0)))
    slabs = []
    for ki in range(3):
        for kj in range(3):
            slab = jax.lax.slice(
                xp,
                (0, ki, kj, 0),
                (n, ki + 2 * (ho - 1) + 1, kj + 2 * (wo - 1) + 1, c),
                (1, 2, 2, 1),
            )  # (N, Ho, Wo, Cin)
            slabs.append(slab)
    patches = jnp.stack(slabs, axis=3)                       # (N,Ho,Wo,9,Cin)
    return patches.reshape(n, ho * wo, 9 * c), ho, wo


@jax.jit
def alpha_predictor(x_nchw, params):
    """Forward pass matching AlphaPredictor(in_planes, out_planes) (eval mode)."""
    n, cin, h, w = x_nchw.shape
    x = jnp.transpose(x_nchw, (0, 2, 3, 1)).astype(jnp.float32)   # NCHW -> NHWC

    # im2col for the main branch + strided gather for the 1x1 shortcut,
    # concatenated into a single matmul operand.
    patches, ho, wo = _im2col_3x3_s2(x)                      # (N, HW, 9*Cin)
    hw = ho * wo
    x_sc = x[:, ::2, ::2, :].reshape(n, hw, cin)             # (N, HW, Cin)
    xcat = jnp.concatenate([patches, x_sc], axis=-1)         # (N, HW, 10*Cin)
    k_dim = 10 * cin

    # Row tiling: multiple of 8, capped so 2x double-buffered tiles stay far
    # below v7x's 64 MiB VMEM even for big Cin.
    tr = min(512, _round_up(hw, 8))
    hw_pad = _round_up(hw, tr)
    if hw_pad != hw:
        xcat = jnp.pad(xcat, ((0, 0), (0, hw_pad - hw), (0, 0)))
    num_r = hw_pad // tr

    cout = params["w_conv"].shape[0]
    cpad = _round_up(cout, 128)

    # Fold BN (inference) into the conv weights / a single combined bias.
    eps = 1e-5
    bnm_s = params["bn1_gamma"] / jnp.sqrt(params["bn1_var"] + eps)
    bnm_b = params["bn1_beta"] - params["bn1_mean"] * bnm_s
    bns_s = params["bn2_gamma"] / jnp.sqrt(params["bn2_var"] + eps)
    bns_b = params["bn2_beta"] - params["bn2_mean"] * bns_s

    # main conv weight: (Cout,Cin,3,3) -> (kh,kw,Cin,Cout) -> (9*Cin, Cout)
    w_main = jnp.transpose(params["w_conv"], (2, 3, 1, 0)).reshape(9 * cin, cout)
    w_main = w_main * bnm_s[None, :]
    # shortcut 1x1 conv weight: (Cout,Cin,1,1) -> (Cin, Cout)
    w_sc = jnp.transpose(params["w_short"][:, :, 0, 0], (1, 0)) * bns_s[None, :]

    w_comb = jnp.concatenate([w_main, w_sc], axis=0)         # (10*Cin, Cout)
    b_comb = (bnm_b + bns_b).reshape(1, cout)

    # zero-pad channels to a lane-dense multiple of 128 (padded channels stay
    # exactly 0 through bias/ReLU/pool and contribute nothing to the FC)
    w_comb = jnp.pad(w_comb, ((0, 0), (0, cpad - cout))).astype(jnp.float32)
    b_comb = jnp.pad(b_comb, ((0, 0), (0, cpad - cout))).astype(jnp.float32)

    # FC (Cout -> 1), padded to a lane-dense (Cpad, 128) with only column 0 real
    w_fc = jnp.zeros((cpad, 128), jnp.float32).at[:cout, 0].set(
        params["w_fc"][0].astype(jnp.float32))
    b_fc = jnp.zeros((1, 128), jnp.float32).at[0, 0].set(
        params["b_fc"][0].astype(jnp.float32))

    kernel = functools.partial(_alpha_predictor_kernel, hw=hw, tr=tr)

    grid_spec = pltpu.PrefetchScalarGridSpec(
        num_scalar_prefetch=0,
        grid=(n, num_r),
        in_specs=[
            pl.BlockSpec((1, tr, k_dim), lambda b, r: (b, r, 0)),
            pl.BlockSpec((k_dim, cpad), lambda b, r: (0, 0)),
            pl.BlockSpec((1, cpad), lambda b, r: (0, 0)),
            pl.BlockSpec((cpad, 128), lambda b, r: (0, 0)),
            pl.BlockSpec((1, 128), lambda b, r: (0, 0)),
        ],
        out_specs=pl.BlockSpec((1, 8, 128), lambda b, r: (b, 0, 0)),
        scratch_shapes=[pltpu.VMEM((1, cpad), jnp.float32)],
    )

    out_pad = pl.pallas_call(
        kernel,
        out_shape=jax.ShapeDtypeStruct((n, 8, 128), jnp.float32),
        grid_spec=grid_spec,
        compiler_params=pltpu.CompilerParams(
            # batch is megacore-parallel (per-sample accumulator, no sharing);
            # row axis is the sequential reduction axis.
            dimension_semantics=("parallel", "arbitrary"),
            # explicit scoped-VMEM budget; fits v7x's 64 MiB per-core VMEM
            vmem_limit_bytes=48 * 1024 * 1024,
        ),
    )(xcat.astype(jnp.float32), w_comb, b_comb, w_fc, b_fc)

    return out_pad[:, 0, 0:1]                                # (N, 1)


# --------------------------- Pure-JAX reference ----------------------------
def alpha_predictor_ref(x_nchw, params):
    eps = 1e-5
    y = jax.lax.conv_general_dilated(
        x_nchw, params["w_conv"], window_strides=(2, 2), padding=((1, 1), (1, 1)),
        dimension_numbers=("NCHW", "OIHW", "NCHW"))
    s1 = params["bn1_gamma"] / jnp.sqrt(params["bn1_var"] + eps)
    y = y * s1[None, :, None, None] + (params["bn1_beta"] - params["bn1_mean"] * s1)[None, :, None, None]
    sc = jax.lax.conv_general_dilated(
        x_nchw, params["w_short"], window_strides=(2, 2), padding=((0, 0), (0, 0)),
        dimension_numbers=("NCHW", "OIHW", "NCHW"))
    s2 = params["bn2_gamma"] / jnp.sqrt(params["bn2_var"] + eps)
    sc = sc * s2[None, :, None, None] + (params["bn2_beta"] - params["bn2_mean"] * s2)[None, :, None, None]
    feat = jnp.maximum(y + sc, 0.0)
    pooled = jnp.mean(feat, axis=(2, 3))
    logits = pooled @ params["w_fc"].T + params["b_fc"]
    return jax.nn.sigmoid(logits)


# ---------------------------------- Main -----------------------------------
if __name__ == "__main__":
    N, C_IN, C_OUT, H, W = 2, 4, 8, 16, 16

    key = jax.random.PRNGKey(0)
    ks = jax.random.split(key, 12)

    params = {
        # ResidualBlock main conv: Conv2d(C_IN, C_OUT, 3, stride=2, pad=1, bias=False)
        "w_conv": 0.1 * jax.random.normal(ks[0], (C_OUT, C_IN, 3, 3), jnp.float32),
        # BatchNorm2d(C_OUT) on main branch (inference statistics)
        "bn1_gamma": 1.0 + 0.1 * jax.random.normal(ks[1], (C_OUT,), jnp.float32),
        "bn1_beta": 0.1 * jax.random.normal(ks[2], (C_OUT,), jnp.float32),
        "bn1_mean": 0.1 * jax.random.normal(ks[3], (C_OUT,), jnp.float32),
        "bn1_var": jnp.abs(jax.random.normal(ks[4], (C_OUT,), jnp.float32)) + 0.5,
        # shortcut: Conv2d(C_IN, C_OUT, 1, stride=2, bias=False) + BatchNorm2d
        "w_short": 0.1 * jax.random.normal(ks[5], (C_OUT, C_IN, 1, 1), jnp.float32),
        "bn2_gamma": 1.0 + 0.1 * jax.random.normal(ks[6], (C_OUT,), jnp.float32),
        "bn2_beta": 0.1 * jax.random.normal(ks[7], (C_OUT,), jnp.float32),
        "bn2_mean": 0.1 * jax.random.normal(ks[8], (C_OUT,), jnp.float32),
        "bn2_var": jnp.abs(jax.random.normal(ks[9], (C_OUT,), jnp.float32)) + 0.5,
        # Linear(C_OUT, 1)
        "w_fc": 0.1 * jax.random.normal(ks[10], (1, C_OUT), jnp.float32),
        "b_fc": 0.1 * jax.random.normal(ks[11], (1,), jnp.float32),
    }

    x = jax.random.normal(key, (N, C_IN, H, W), jnp.float32)   # NCHW, like PyTorch

    out = jax.block_until_ready(alpha_predictor(x, params))
    ref = jax.block_until_ready(alpha_predictor_ref(x, params))

    assert out.shape == (N, 1), out.shape
    assert jnp.allclose(out, ref, rtol=1e-4, atol=1e-5), (out, ref)
    print("KERNEL_OK")
</pallas_src>

<mosaic_0001>
module attributes {stable_mosaic.version = 11 : i64} {
  func.func @_alpha_predictor_kernel(%arg0: i32, %arg1: i32, %arg2: memref<1x64x40xf32, #tpu.memory_space<vmem>>, %arg3: memref<40x128xf32, #tpu.memory_space<vmem>>, %arg4: memref<1x128xf32, #tpu.memory_space<vmem>>, %arg5: memref<128x128xf32, #tpu.memory_space<vmem>>, %arg6: memref<1x128xf32, #tpu.memory_space<vmem>>, %arg7: memref<1x8x128xf32, #tpu.memory_space<vmem>>, %arg8: memref<1x128xf32, #tpu.memory_space<vmem>>) attributes {dimension_semantics = [#tpu.dimension_semantics<parallel>, #tpu.dimension_semantics<arbitrary>], iteration_bounds = array<i64: 2, 1>, scalar_prefetch = 0 : i64, scratch_operands = 1 : i64, tpu.core_type = #tpu.core_type<tc>, window_params = [{transform_indices = @transform_0, window_bounds = array<i64: 1, 64, 40>}, {pipeline_mode = #tpu.pipeline_mode<synchronous>, transform_indices = @transform_1, window_bounds = array<i64: 40, 128>}, {pipeline_mode = #tpu.pipeline_mode<synchronous>, transform_indices = @transform_2, window_bounds = array<i64: 1, 128>}, {pipeline_mode = #tpu.pipeline_mode<synchronous>, transform_indices = @transform_3, window_bounds = array<i64: 128, 128>}, {pipeline_mode = #tpu.pipeline_mode<synchronous>, transform_indices = @transform_4, window_bounds = array<i64: 1, 128>}, {transform_indices = @transform_5, window_bounds = array<i64: 1, 8, 128>}]} {
    %c0_i32 = arith.constant 0 : i32
    %0 = arith.cmpi eq, %arg1, %c0_i32 : i32
    %1 = arith.extui %0 : i1 to i32
    %c0_i32_0 = arith.constant 0 : i32
    %2 = arith.cmpi ne, %1, %c0_i32_0 : i32
    scf.if %2 {
      %cst_17 = arith.constant 0.000000e+00 : f32
      %30 = vector.broadcast %cst_17 : f32 to vector<1x128xf32>
      %c0_18 = arith.constant 0 : index
      %c0_19 = arith.constant 0 : index
      %31 = vector.load %arg8[%c0_18, %c0_19] : memref<1x128xf32, #tpu.memory_space<vmem>>, vector<1x128xf32>
      tpu.vector_store %arg8[%c0_18, %c0_19], %30 {strides = array<i32>} : memref<1x128xf32, #tpu.memory_space<vmem>>, vector<1x128xf32>,
    } else {
    }
    %c0 = arith.constant 0 : index
    %c0_1 = arith.constant 0 : index
    %c0_2 = arith.constant 0 : index
    %3 = vector.load %arg2[%c0, %c0_1, %c0_2] : memref<1x64x40xf32, #tpu.memory_space<vmem>>, vector<1x64x40xf32>
    %4 = vector.shape_cast %3 : vector<1x64x40xf32> to vector<64x40xf32>
    %c0_3 = arith.constant 0 : index
    %c0_4 = arith.constant 0 : index
    %5 = vector.load %arg3[%c0_3, %c0_4] : memref<40x128xf32, #tpu.memory_space<vmem>>, vector<40x128xf32>
    %cst = arith.constant dense<0.000000e+00> : vector<64x128xf32>
    %6 = tpu.matmul %4, %5, %cst {dimension_numbers = #tpu.dot_dimension_numbers<[1], [0], [0], [1], [0, 0, 1, 1], [], []>} : vector<64x40xf32>, vector<40x128xf32>, vector<64x128xf32> -> vector<64x128xf32>
    %c0_5 = arith.constant 0 : index
    %c0_6 = arith.constant 0 : index
    %7 = vector.load %arg4[%c0_5, %c0_6] : memref<1x128xf32, #tpu.memory_space<vmem>>, vector<1x128xf32>
    %8 = vector.broadcast %7 : vector<1x128xf32> to vector<64x128xf32>
    %9 = arith.addf %6, %8 : vector<64x128xf32>
    %cst_7 = arith.constant 0.000000e+00 : f32
    %10 = vector.broadcast %cst_7 : f32 to vector<64x128xf32>
    %11 = arith.maximumf %9, %10 : vector<64x128xf32>
    %12 = tpu.iota {dimensions = array<i32: 0>} : vector<64x1xi32>
    %c64_i32 = arith.constant 64 : i32
    %13 = arith.muli %arg1, %c64_i32 : i32
    %14 = vector.broadcast %13 : i32 to vector<64x1xi32>
    %15 = arith.addi %12, %14 : vector<64x1xi32>
    %c64_i32_8 = arith.constant 64 : i32
    %16 = vector.broadcast %c64_i32_8 : i32 to vector<64x1xi32>
    %17 = arith.cmpi slt, %15, %16 : vector<64x1xi32>
    %cst_9 = arith.constant 0.000000e+00 : f32
    %18 = vector.shape_cast %17 : vector<64x1xi1> to vector<64x1xi1>
    %19 = vector.broadcast %18 : vector<64x1xi1> to vector<64x128xi1>
    %20 = vector.broadcast %cst_9 : f32 to vector<64x128xf32>
    %21 = arith.select %19, %11, %20 : vector<64x128xi1>, vector<64x128xf32>
    %c0_10 = arith.constant 0 : index
    %c0_11 = arith.constant 0 : index
    %22 = vector.load %arg8[%c0_10, %c0_11] : memref<1x128xf32, #tpu.memory_space<vmem>>, vector<1x128xf32>
    %cst_12 = arith.constant dense<0.000000e+00> : vector<128xf32>
    %23 = vector.multi_reduction <add>, %21, %cst_12 [0] : vector<64x128xf32> to vector<128xf32>
    %24 = vector.shape_cast %23 : vector<128xf32> to vector<1x128xf32>
    %25 = arith.addf %22, %24 : vector<1x128xf32>
    %c0_13 = arith.constant 0 : index
    %c0_14 = arith.constant 0 : index
    %26 = vector.load %arg8[%c0_13, %c0_14] : memref<1x128xf32, #tpu.memory_space<vmem>>, vector<1x128xf32>
    tpu.vector_store %arg8[%c0_13, %c0_14], %25 {strides = array<i32>} : memref<1x128xf32, #tpu.memory_space<vmem>>, vector<1x128xf32>,
    %c0_i32_15 = arith.constant 0 : i32
    %27 = arith.cmpi eq, %arg1, %c0_i32_15 : i32
    %28 = arith.extui %27 : i1 to i32
    %c0_i32_16 = arith.constant 0 : i32
    %29 = arith.cmpi ne, %28, %c0_i32_16 : i32
    scf.if %29 {
      %c0_17 = arith.constant 0 : index
      %c0_18 = arith.constant 0 : index
      %30 = vector.load %arg8[%c0_17, %c0_18] : memref<1x128xf32, #tpu.memory_space<vmem>>, vector<1x128xf32>
      %cst_19 = arith.constant 1.562500e-02 : f32
      %31 = vector.broadcast %cst_19 : f32 to vector<1x128xf32>
      %32 = arith.mulf %30, %31 : vector<1x128xf32>
      %c0_20 = arith.constant 0 : index
      %c0_21 = arith.constant 0 : index
      %33 = vector.load %arg5[%c0_20, %c0_21] : memref<128x128xf32, #tpu.memory_space<vmem>>, vector<128x128xf32>
      %cst_22 = arith.constant dense<0.000000e+00> : vector<1x128xf32>
      %34 = tpu.matmul %32, %33, %cst_22 {dimension_numbers = #tpu.dot_dimension_numbers<[1], [0], [0], [1], [0, 0, 1, 1], [], []>} : vector<1x128xf32>, vector<128x128xf32>, vector<1x128xf32> -> vector<1x128xf32>
      %c0_23 = arith.constant 0 : index
      %c0_24 = arith.constant 0 : index
      %35 = vector.load %arg6[%c0_23, %c0_24] : memref<1x128xf32, #tpu.memory_space<vmem>>, vector<1x128xf32>
      %36 = arith.addf %34, %35 : vector<1x128xf32>
      %cst_25 = arith.constant 0.000000e+00 : f32
      %37 = vector.broadcast %cst_25 : f32 to vector<1x128xf32>
      %38 = arith.subf %37, %36 : vector<1x128xf32>
      %39 = math.exp %38 : vector<1x128xf32>
      %cst_26 = arith.constant 1.000000e+00 : f32
      %40 = vector.broadcast %cst_26 : f32 to vector<1x128xf32>
      %41 = arith.addf %40, %39 : vector<1x128xf32>
      %cst_27 = arith.constant 1.000000e+00 : f32
      %42 = vector.broadcast %cst_27 : f32 to vector<1x128xf32>
      %43 = arith.divf %42, %41 : vector<1x128xf32>
      %44 = vector.shape_cast %43 : vector<1x128xf32> to vector<1x128xf32>
      %45 = vector.broadcast %44 : vector<1x128xf32> to vector<8x128xf32>
      %c0_28 = arith.constant 0 : index
      %c0_29 = arith.constant 0 : index
      %c0_30 = arith.constant 0 : index
      %46 = vector.load %arg7[%c0_28, %c0_29, %c0_30] : memref<1x8x128xf32, #tpu.memory_space<vmem>>, vector<1x8x128xf32>
      %47 = vector.shape_cast %46 : vector<1x8x128xf32> to vector<8x128xf32>
      %48 = vector.shape_cast %45 : vector<8x128xf32> to vector<1x8x128xf32>
      tpu.vector_store %arg7[%c0_28, %c0_29, %c0_30], %48 {strides = array<i32>} : memref<1x8x128xf32, #tpu.memory_space<vmem>>, vector<1x8x128xf32>,
    } else {
    }
    return
  }
  func.func @transform_0(%arg0: i32, %arg1: i32) -> (i32, i32, i32) {
    %c0_i32 = arith.constant 0 : i32
    %c0_i32_0 = arith.constant 0 : i32
    return %arg0, %arg1, %c0_i32 : i32, i32, i32
  }
  func.func @transform_1(%arg0: i32, %arg1: i32) -> (i32, i32) {
    %c0_i32 = arith.constant 0 : i32
    %c0_i32_0 = arith.constant 0 : i32
    %c0_i32_1 = arith.constant 0 : i32
    return %c0_i32, %c0_i32_0 : i32, i32
  }
  func.func @transform_2(%arg0: i32, %arg1: i32) -> (i32, i32) {
    %c0_i32 = arith.constant 0 : i32
    %c0_i32_0 = arith.constant 0 : i32
    %c0_i32_1 = arith.constant 0 : i32
    return %c0_i32, %c0_i32_0 : i32, i32
  }
  func.func @transform_3(%arg0: i32, %arg1: i32) -> (i32, i32) {
    %c0_i32 = arith.constant 0 : i32
    %c0_i32_0 = arith.constant 0 : i32
    %c0_i32_1 = arith.constant 0 : i32
    return %c0_i32, %c0_i32_0 : i32, i32
  }
  func.func @transform_4(%arg0: i32, %arg1: i32) -> (i32, i32) {
    %c0_i32 = arith.constant 0 : i32
    %c0_i32_0 = arith.constant 0 : i32
    %c0_i32_1 = arith.constant 0 : i32
    return %c0_i32, %c0_i32_0 : i32, i32
  }
  func.func @transform_5(%arg0: i32, %arg1: i32) -> (i32, i32, i32) {
    %c0_i32 = arith.constant 0 : i32
    %c0_i32_0 = arith.constant 0 : i32
    %c0_i32_1 = arith.constant 0 : i32
    return %arg0, %c0_i32, %c0_i32_0 : i32, i32, i32
  }
}

</mosaic_0001>

<llo_original>
// kernel: alpha_predictor.1
$region0: #{alpha_predictor.1}
  #allocation0 [shape = 'u32[]', space=smem, size = 0x4, offset = 0x4, fixed_abs, tag = 'smem constant byte address 0x4 - core index']
  #allocation1 [shape = 'u32[144,128]{1,0:T(1,128)}', space=vmem, size = 0x12000, scoped, tag = 'internal scratch']
  #allocation2 [shape = 'f32[1,128]{1,0:T(1,128)}', space=vmem, size = 0x200, scoped, tag = 'scratch operand']
  %s0 = inlined_call_operand.vmem [shape: f32[2,64,40], index: 0, kind: input, shape index: {}]
  %s1 = inlined_call_operand.vmem [shape: f32[40,128], index: 1, kind: input, shape index: {}]
  %s2 = inlined_call_operand.vmem [shape: f32[1,128], index: 2, kind: input, shape index: {}]
  %s3 = inlined_call_operand.vmem [shape: f32[128,128], index: 3, kind: input, shape index: {}]
  %s4 = inlined_call_operand.vmem [shape: f32[1,128], index: 4, kind: input, shape index: {}]
  %s5 = inlined_call_operand.vmem [shape: f32[2,8,128], index: 5, kind: output, shape index: {}]
  %s6 = sld [smem:[#allocation0]]
  $region61: #{alpha_predictor.1} parent=0
    _
  %s8 = ssub.s32 1, %s6
  %s9 = scalar_select 0, %s8, %s6
  loop: start=0, step=1, limit=4
  $region2: #{alpha_predictor.1} parent=0 // loop_pre_header
    _
  $region3: #{alpha_predictor.1} parent=0 // loop_header
    %s11 = sphi 0, %s15
    %p12 = scmp.ge.s32.totalorder %s11, 4
    %s18 = sphi 0, %s30
    %s19 = sphi 0, %s26
    %s20 = sphi 0, %s18
    %s21 = sphi 0, %s19
    %s22 = sphi 0, %s20
    %s23 = sphi 0, %s21
    %s35 = sphi 0, %s37
    %s38 = sphi 0, %s35
    %s39 = sphi 0, %s38
    %s55 = sphi 0, %s39
    %s59 = sphi 0, %s59
    %s61 = sphi 0, %s59
    %s62 = sphi 0, %s61
    %s76 = sphi 0, %s62
    %s80 = sphi 0, %s80
    %s82 = sphi 0, %s80
    %s83 = sphi 0, %s82
    %s97 = sphi 0, %s83
    %s101 = sphi 0, %s101
    %s103 = sphi 0, %s101
    %s104 = sphi 0, %s103
    %s118 = sphi 0, %s104
    %s122 = sphi 0, %s122
    %s124 = sphi 0, %s122
    %s125 = sphi 0, %s124
    %s139 = sphi 0, %s125
    %s145 = sphi 0, %s147
    %s148 = sphi 0, %s145
    %s149 = sphi 0, %s148
    %s165 = sphi 0, %s149
  $region4: #{alpha_predictor.1} parent=0 // loop_header_branch
    %14 = sbr.rel (%p12) target = $region8
  $region5: #{alpha_predictor.1} parent=0 // loop_body
    %s16 = ssub.s32 %s11, 1
    %s17 = ssub.s32 %s11, 2
    %s24 = sadd.s32 1, %s19
    %p25 = scmp.ge.s32.totalorder %s24, 1
    %s26 = scalar_select %p25, 0, %s24
    %s27 = sadd.s32 1, %s18
    %s28 = scalar_select %p25, %s27, %s18
    %p29 = scmp.ge.s32.totalorder %s28, 2
    %s30 = scalar_select %p29, 0, %s28
    %s31 = ssub.s32 %s18, %s30
    %s32 = ssub.s32 %s19, %s26
    %s33 = sor.u32 %s31, %s32
    %p34 = scmp.eq.s32.totalorder %s33, 0
    %s36 = sadd.s32 %s35, 1
    %s37 = scalar_select %p34, %s35, %s36
    %p40 = pneg %p34
    %p41 = scmp.eq.s32.totalorder %s11, 1
    %p42 = por %p40, %p41
    %p43 = scmp.ne.s32.totalorder %s35, %s38
    %p44 = scmp.eq.s32.totalorder %s11, 0
    %p45 = por %p43, %p44
    %p46 = scmp.ne.s32.totalorder %s35, %s38
    %p47 = scmp.eq.s32.totalorder %s16, 1
    %p48 = por %p46, %p47
    %p49 = scmp.ne.s32.totalorder %s38, %s39
    %p50 = scmp.eq.s32.totalorder %s16, 0
    %p51 = por %p49, %p50
    %p52 = scmp.ne.s32.totalorder %s38, %s39
    %p53 = scmp.eq.s32.totalorder %s17, 1
    %p54 = por %p52, %p53
    %p56 = scmp.ne.s32.totalorder %s39, %s55
    %p57 = scmp.eq.s32.totalorder %s17, 0
    %p58 = por %p56, %p57
    %s60 = sadd.s32 %s59, 1
    %p63 = scmp.eq.s32.totalorder %s11, 1
    %p64 = scmp.ne.s32.totalorder %s59, %s61
    %p65 = scmp.eq.s32.totalorder %s11, 0
    %p66 = por %p64, %p65
    %p67 = scmp.ne.s32.totalorder %s59, %s61
    %p68 = scmp.eq.s32.totalorder %s16, 1
    %p69 = por %p67, %p68
    %p70 = scmp.ne.s32.totalorder %s61, %s62
    %p71 = scmp.eq.s32.totalorder %s16, 0
    %p72 = por %p70, %p71
    %p73 = scmp.ne.s32.totalorder %s61, %s62
    %p74 = scmp.eq.s32.totalorder %s17, 1
    %p75 = por %p73, %p74
    %p77 = scmp.ne.s32.totalorder %s62, %s76
    %p78 = scmp.eq.s32.totalorder %s17, 0
    %p79 = por %p77, %p78
    %s81 = sadd.s32 %s80, 1
    %p84 = scmp.eq.s32.totalorder %s11, 1
    %p85 = scmp.ne.s32.totalorder %s80, %s82
    %p86 = scmp.eq.s32.totalorder %s11, 0
    %p87 = por %p85, %p86
    %p88 = scmp.ne.s32.totalorder %s80, %s82
    %p89 = scmp.eq.s32.totalorder %s16, 1
    %p90 = por %p88, %p89
    %p91 = scmp.ne.s32.totalorder %s82, %s83
    %p92 = scmp.eq.s32.totalorder %s16, 0
    %p93 = por %p91, %p92
    %p94 = scmp.ne.s32.totalorder %s82, %s83
    %p95 = scmp.eq.s32.totalorder %s17, 1
    %p96 = por %p94, %p95
    %p98 = scmp.ne.s32.totalorder %s83, %s97
    %p99 = scmp.eq.s32.totalorder %s17, 0
    %p100 = por %p98, %p99
    %s102 = sadd.s32 %s101, 1
    %p105 = scmp.eq.s32.totalorder %s11, 1
    %p106 = scmp.ne.s32.totalorder %s101, %s103
    %p107 = scmp.eq.s32.totalorder %s11, 0
    %p108 = por %p106, %p107
    %p109 = scmp.ne.s32.totalorder %s101, %s103
    %p110 = scmp.eq.s32.totalorder %s16, 1
    %p111 = por %p109, %p110
    %p112 = scmp.ne.s32.totalorder %s103, %s104
    %p113 = scmp.eq.s32.totalorder %s16, 0
    %p114 = por %p112, %p113
    %p115 = scmp.ne.s32.totalorder %s103, %s104
    %p116 = scmp.eq.s32.totalorder %s17, 1
    %p117 = por %p115, %p116
    %p119 = scmp.ne.s32.totalorder %s104, %s118
    %p120 = scmp.eq.s32.totalorder %s17, 0
    %p121 = por %p119, %p120
    %s123 = sadd.s32 %s122, 1
    %p126 = scmp.eq.s32.totalorder %s11, 1
    %p127 = scmp.ne.s32.totalorder %s122, %s124
    %p128 = scmp.eq.s32.totalorder %s11, 0
    %p129 = por %p127, %p128
    %p130 = scmp.ne.s32.totalorder %s122, %s124
    %p131 = scmp.eq.s32.totalorder %s16, 1
    %p132 = por %p130, %p131
    %p133 = scmp.ne.s32.totalorder %s124, %s125
    %p134 = scmp.eq.s32.totalorder %s16, 0
    %p135 = por %p133, %p134
    %p136 = scmp.ne.s32.totalorder %s124, %s125
    %p137 = scmp.eq.s32.totalorder %s17, 1
    %p138 = por %p136, %p137
    %p140 = scmp.ne.s32.totalorder %s125, %s139
    %p141 = scmp.eq.s32.totalorder %s17, 0
    %p142 = por %p140, %p141
    %s143 = ssub.s32 %s18, %s30
    %p144 = scmp.eq.s32.totalorder %s143, 0
    %s146 = sadd.s32 %s145, 1
    %s147 = scalar_select %p144, %s145, %s146
    %p150 = pneg %p144
    %p151 = scmp.eq.s32.totalorder %s11, 1
    %p152 = por %p150, %p151
    %p153 = scmp.ne.s32.totalorder %s145, %s148
    %p154 = scmp.eq.s32.totalorder %s11, 0
    %p155 = por %p153, %p154
    %p156 = scmp.ne.s32.totalorder %s145, %s148
    %p157 = scmp.eq.s32.totalorder %s16, 1
    %p158 = por %p156, %p157
    %p159 = scmp.ne.s32.totalorder %s148, %s149
    %p160 = scmp.eq.s32.totalorder %s16, 0
    %p161 = por %p159, %p160
    %p162 = scmp.ne.s32.totalorder %s148, %s149
    %p163 = scmp.eq.s32.totalorder %s17, 1
    %p164 = por %p162, %p163
    %p166 = scmp.ne.s32.totalorder %s149, %s165
    %p167 = scmp.eq.s32.totalorder %s17, 0
    %p168 = por %p166, %p167
    %p169 = scmp.le.s32.totalorder 1, %s11
    %p170 = scmp.lt.s32.totalorder %s11, 3
    %p171 = pnand %p169, %p170
    %p172 = pneg %p171
    // Predicated region
    $region9: #{alpha_predictor.1} parent=5 // pred_check
      _
    $region10: #{alpha_predictor.1} parent=5 // pred_check_branch
      %174 = sbr.rel (%p171) target = $region12
    $region11: #{alpha_predictor.1} parent=5 // pred_region
      %s175 = ssub.s32 %s11, 1
      // Predicated region
      $region13: #{alpha_predictor.1} parent=11 // pred_check
        %p176 = pneg %p72
      $region14: #{alpha_predictor.1} parent=11 // pred_check_branch
        %178 = sbr.rel (%p176) target = $region16
      $region15: #{alpha_predictor.1} parent=11 // pred_region
        _
      $region16: #{alpha_predictor.1} parent=11 // pred_fallthru
        _
      // Predicated region
      $region17: #{alpha_predictor.1} parent=11 // pred_check
        %p179 = pneg %p93
      $region18: #{alpha_predictor.1} parent=11 // pred_check_branch
        %181 = sbr.rel (%p179) target = $region20
      $region19: #{alpha_predictor.1} parent=11 // pred_region
        _
      $region20: #{alpha_predictor.1} parent=11 // pred_fallthru
        _
      // Predicated region
      $region21: #{alpha_predictor.1} parent=11 // pred_check
        %p182 = pneg %p114
      $region22: #{alpha_predictor.1} parent=11 // pred_check_branch
        %184 = sbr.rel (%p182) target = $region24
      $region23: #{alpha_predictor.1} parent=11 // pred_region
        _
      $region24: #{alpha_predictor.1} parent=11 // pred_fallthru
        _
      // Predicated region
      $region25: #{alpha_predictor.1} parent=11 // pred_check
        %p185 = pneg %p135
      $region26: #{alpha_predictor.1} parent=11 // pred_check_branch
        %187 = sbr.rel (%p185) target = $region28
      $region27: #{alpha_predictor.1} parent=11 // pred_region
        _
      $region28: #{alpha_predictor.1} parent=11 // pred_fallthru
        _
    $region12: #{alpha_predictor.1} parent=5 // pred_fallthru
      _
    %p188 = scmp.lt.s32.totalorder %s11, 2
    // Predicated region
    $region29: #{alpha_predictor.1} parent=5 // pred_check
      %p189 = pneg %p188
    $region30: #{alpha_predictor.1} parent=5 // pred_check_branch
      %191 = sbr.rel (%p189) target = $region32
    $region31: #{alpha_predictor.1} parent=5 // pred_region
      // Predicated region
      $region33: #{alpha_predictor.1} parent=31 // pred_check
        %p192 = pneg %p45
      $region34: #{alpha_predictor.1} parent=31 // pred_check_branch
        %194 = sbr.rel (%p192) target = $region36
      $region35: #{alpha_predictor.1} parent=31 // pred_region
        %s195 = smul.u32 8, %s19
        %p196 = scmp.lt.s32.totalorder %s18, 1
        %s197 = scalar_select %p196, %s18, 1
        %p198 = scmp.lt.s32.totalorder %s195, 7
        %s199 = scalar_select %p198, %s195, 7
        %s200 = smul.addr %s197, 8
        %s201 = sadd.s32 %s199, %s200
        %s202 = smul.addr %s201, 8
        %s203 = scalar_lea.vmem %s0, %s202
        %s204 = smul.u32 8, %s19
      $region36: #{alpha_predictor.1} parent=31 // pred_fallthru
        _
    $region32: #{alpha_predictor.1} parent=5 // pred_fallthru
      _
    %p205 = scmp.le.s32.totalorder 1, %s11
    %p206 = scmp.lt.s32.totalorder %s11, 3
    %p207 = pnand %p205, %p206
    %p208 = pneg %p207
    // Predicated region
    $region37: #{alpha_predictor.1} parent=5 // pred_check
      _
    $region38: #{alpha_predictor.1} parent=5 // pred_check_branch
      %210 = sbr.rel (%p207) target = $region40
    $region39: #{alpha_predictor.1} parent=5 // pred_region
      %s211 = ssub.s32 %s11, 1
      %s212 = smul.u32 8, %s21
      %p213 = scmp.lt.s32.totalorder %s20, 1
      %s214 = scalar_select %p213, %s20, 1
      %p215 = scmp.lt.s32.totalorder %s212, 7
      %s216 = scalar_select %p215, %s212, 7
      %s217 = smul.addr %s214, 8
      %s218 = sadd.s32 %s216, %s217
      %s219 = smul.addr %s218, 8
      %s220 = scalar_lea.vmem %s0, %s219
      %p221 = pneg %p51
      %p222 = pneg %p48
      %p223 = pneg %p72
      %p224 = pneg %p69
      %p225 = pneg %p93
      %p226 = pneg %p90
      %p227 = pneg %p114
      %p228 = pneg %p111
      %p229 = pneg %p135
      %p230 = pneg %p132
      %p231 = pneg %p161
      %p232 = pneg %p158
      %p233 = scmp.lt.s32.totalorder %s20, 1
      %s234 = scalar_select %p233, %s20, 1
      %s235 = smul.addr %s234, 8
      %s236 = scalar_lea.vmem %s5, %s235
      %s237 = smul.u32 8, %s21
      %p238 = scmp.lt.s32.totalorder %s20, 1
      %s239 = scalar_select %p238, %s20, 1
      %p240 = scmp.lt.s32.totalorder %s237, 7
      %s241 = scalar_select %p240, %s237, 7
      %s242 = smul.addr %s239, 8
      %s243 = sadd.s32 %s241, %s242
      %s244 = smul.addr %s243, 8
      %s245 = scalar_lea.vmem %s0, %s244
      %s246 = smul.u32 8, %s21
      %p247 = scmp.lt.s32.totalorder %s20, 1
      %s248 = scalar_select %p247, %s20, 1
      %s249 = smul.addr %s248, 8
      %s250 = scalar_lea.vmem %s5, %s249
      %p251 = scmp.eq.s32.totalorder %s21, 0
      // Predicated region
      $region41: #{alpha_predictor.1} parent=39 // pred_check
        %p252 = pneg %p251
      $region42: #{alpha_predictor.1} parent=39 // pred_check_branch
        %254 = sbr.rel (%p252) target = $region44
      $region43: #{alpha_predictor.1} parent=39 // pred_region
        %255 = vst [vmem:[#allocation2] sm:$0x1] 0.0
      $region44: #{alpha_predictor.1} parent=39 // pred_fallthru
        _
      %v256 = vld [vmem:[%s245] sm:$0xff]
      %v257 = vld [vmem:[%s245 + $0x8] sm:$0xff]
      %v258 = vld [vmem:[%s245 + $0x10] sm:$0xff]
      %v259 = vld [vmem:[%s245 + $0x18] sm:$0xff]
      %v260 = vld [vmem:[%s245 + $0x20] sm:$0xff]
      %v261 = vld [vmem:[%s245 + $0x28] sm:$0xff]
      %v262 = vld [vmem:[%s245 + $0x30] sm:$0xff]
      %v263 = vld [vmem:[%s245 + $0x38] sm:$0xff]
      %v264 = vld [vmem:[%s1] sm:$0xff]
      %v265 = vld [vmem:[%s1 + $0x8] sm:$0xff]
      %v266 = vld [vmem:[%s1 + $0x10] sm:$0xff]
      %v267 = vld [vmem:[%s1 + $0x18] sm:$0xff]
      %v268 = vld [vmem:[%s1 + $0x20] sm:$0xff]
      %v269 = vld [vmem:[%s2] sm:$0x1]
      %v271 = vlaneseq
      %v272 = vshrl.u32 %v271, 7
      %v273 = vsub.s32 0, %v272
      %v274 = vrot.slane %v269, %v273
      %vm276 = vcmask 326656
      %v278 = vsel %vm276, %v256, 0
      %v281 = vsel %vm276, %v257, 0
      %v284 = vsel %vm276, %v258, 0
      %v287 = vsel %vm276, %v259, 0
      %v290 = vsel %vm276, %v260, 0
      %v293 = vsel %vm276, %v261, 0
      %v296 = vsel %vm276, %v262, 0
      %v299 = vsel %vm276, %v263, 0
      %301 = vmatprep.subr.mxu0 0.0
      %302 = vmatpush1.msra.mxu0 %v264
      %303 = vmatprep.subr.mxu0 0.0
      %304 = vmatpush1.msra.mxu0 %v265
      %305 = vmatprep.subr.mxu0 0.0
      %306 = vmatpush1.msra.mxu0 %v266
      %307 = vmatprep.subr.mxu0 0.0
      %308 = vmatpush1.msra.mxu0 %v267
      %309 = vmatprep.subr.mxu0 0.0
      %310 = vmatpush1.msra.mxu0 %v268
      %311 = vmatprep.subr.mxu0 0.0
      %312 = vmatpush1.msra.mxu0 0.0
      %313 = vmatprep.subr.mxu0 0.0
      %314 = vmatpush1.msra.mxu0 0.0
      %315 = vmatprep.subr.mxu0 0.0
      %316 = vmatpush1.msra.mxu0 0.0
      %317 = vmatprep.subr.mxu0 0.0
      %318 = vmatpush1.msra.mxu0 0.0
      %319 = vmatprep.subr.mxu0 0.0
      %320 = vmatpush1.msra.mxu0 0.0
      %321 = vmatprep.subr.mxu0 0.0
      %322 = vmatpush1.msra.mxu0 0.0
      %323 = vmatprep.subr.mxu0 0.0
      %324 = vmatpush1.msra.mxu0 0.0
      %325 = vmatprep.subr.mxu0 0.0
      %326 = vmatpush1.msra.mxu0 0.0
      %327 = vmatprep.subr.mxu0 0.0
      %328 = vmatpush1.msra.mxu0 0.0
      %329 = vmatprep.subr.mxu0 0.0
      %330 = vmatpush1.msra.mxu0 0.0
      %331 = vmatprep.subr.mxu0 0.0
      %332 = vmatpush1.msra.mxu0 0.0
      %333 = vmatprep.subr.mxu0 0.0
      %334 = vmatpush1.msra.mxu0 0.0
      %335 = vmatprep.subr.mxu0 0.0
      %336 = vmatpush1.msra.mxu0 0.0
      %337 = vmatprep.subr.mxu0 0.0
      %338 = vmatpush1.msra.mxu0 0.0
      %339 = vmatprep.subr.mxu0 0.0
      %340 = vmatpush1.msra.mxu0 0.0
      %341 = vmatprep.subr.mxu0 0.0
      %342 = vmatpush1.msra.mxu0 0.0
      %343 = vmatprep.subr.mxu0 0.0
      %344 = vmatpush1.msra.mxu0 0.0
      %345 = vmatprep.subr.mxu0 0.0
      %346 = vmatpush1.msra.mxu0 0.0
      %347 = vmatprep.subr.mxu0 0.0
      %348 = vmatpush1.msra.mxu0 0.0
      %349 = vmatprep.subr.mxu0 0.0
      %350 = vmatpush1.msra.mxu0 0.0
      %351 = vmatprep.subr.mxu0 0.0
      %352 = vmatpush1.msra.mxu0 0.0
      %353 = vmatprep.subr.mxu0 0.0
      %354 = vmatpush1.msra.mxu0 0.0
      %355 = vmatprep.subr.mxu0 0.0
      %356 = vmatpush1.msra.mxu0 0.0
      %357 = vmatprep.subr.mxu0 0.0
      %358 = vmatpush1.msra.mxu0 0.0
      %359 = vmatprep.subr.mxu0 0.0
      %360 = vmatpush1.msra.mxu0 0.0
      %361 = vmatprep.subr.mxu0 0.0
      %362 = vmatpush1.msra.mxu0 0.0
      %363 = vmatprep.subr.mxu0 0.0
      %364 = vmatpush1.msra.mxu0 0.0
      %365 = vmatprep.mubr.f32.mxu0 0.0
      %366 = vmatmul.mubr.f32.gmra.mrb[0].mxu0 %v278
      %v367 = vpop.f32.mrb[0].mxu0
      %v368 = vadd.f32 %v274, %v367
      %v369 = vpop.f32.mrb[0].mxu0
      %370 = vmatprep.mubr.f32.mxu0 0.0
      %371 = vmatmul.mubr.f32.gmra.mrb[0].mxu0 %v281
      %v372 = vpop.f32.mrb[0].mxu0
      %v373 = vadd.f32 %v274, %v372
      %v374 = vpop.f32.mrb[0].mxu0
      %375 = vmatprep.mubr.f32.mxu0 0.0
      %376 = vmatmul.mubr.f32.gmra.mrb[0].mxu0 %v284
      %v377 = vpop.f32.mrb[0].mxu0
      %v378 = vadd.f32 %v274, %v377
      %v379 = vpop.f32.mrb[0].mxu0
      %380 = vmatprep.mubr.f32.mxu0 0.0
      %381 = vmatmul.mubr.f32.gmra.mrb[0].mxu0 %v287
      %v382 = vpop.f32.mrb[0].mxu0
      %v383 = vadd.f32 %v274, %v382
      %v384 = vpop.f32.mrb[0].mxu0
      %385 = vmatprep.mubr.f32.mxu0 0.0
      %386 = vmatmul.mubr.f32.gmra.mrb[0].mxu0 %v290
      %v387 = vpop.f32.mrb[0].mxu0
      %v388 = vadd.f32 %v274, %v387
      %v389 = vpop.f32.mrb[0].mxu0
      %390 = vmatprep.mubr.f32.mxu0 0.0
      %391 = vmatmul.mubr.f32.gmra.mrb[0].mxu0 %v293
      %v392 = vpop.f32.mrb[0].mxu0
      %v393 = vadd.f32 %v274, %v392
      %v394 = vpop.f32.mrb[0].mxu0
      %395 = vmatprep.mubr.f32.mxu0 0.0
      %396 = vmatmul.mubr.f32.gmra.mrb[0].mxu0 %v296
      %v397 = vpop.f32.mrb[0].mxu0
      %v398 = vadd.f32 %v274, %v397
      %v399 = vpop.f32.mrb[0].mxu0
      %400 = vmatprep.mubr.f32.mxu0 0.0
      %401 = vmatmul.mubr.f32.gmra.mrb[0].mxu0 %v299
      %v402 = vpop.f32.mrb[0].mxu0
      %v403 = vadd.f32 %v274, %v402
      %v404 = vpop.f32.mrb[0].mxu0
      %405 = vdwg.mxu0
      %v406 = vmax.f32 %v368, 0.0
      %v407 = vmax.f32 %v373, 0.0
      %v408 = vmax.f32 %v378, 0.0
      %v409 = vmax.f32 %v383, 0.0
      %v410 = vmax.f32 %v388, 0.0
      %v411 = vmax.f32 %v393, 0.0
      %v412 = vmax.f32 %v398, 0.0
      %v413 = vmax.f32 %v403, 0.0
      %v414 = vlaneseq
      %v415 = vshrl.u32 %v414, 7
      %v416 = vadd.s32 %v415, 8
      %v417 = vadd.s32 %v415, 16
      %v418 = vadd.s32 %v415, 24
      %v419 = vadd.s32 %v415, 32
      %v420 = vadd.s32 %v415, 40
      %v421 = vadd.s32 %v415, 48
      %v422 = vadd.s32 %v415, 56
      %s423 = smul.u32 %s21, 64
      %v424 = vstv %s423
      %v425 = vadd.s32 %v415, %v424
      %v426 = vadd.s32 %v416, %v424
      %v427 = vadd.s32 %v417, %v424
      %v428 = vadd.s32 %v418, %v424
      %v429 = vadd.s32 %v419, %v424
      %v430 = vadd.s32 %v420, %v424
      %v431 = vadd.s32 %v421, %v424
      %v432 = vadd.s32 %v422, %v424
      %vm433 = vcmp.lt.s32.totalorder %v425, 64
      %vm434 = vcmp.lt.s32.totalorder %v426, 64
      %vm435 = vcmp.lt.s32.totalorder %v427, 64
      %vm436 = vcmp.lt.s32.totalorder %v428, 64
      %vm437 = vcmp.lt.s32.totalorder %v429, 64
      %vm438 = vcmp.lt.s32.totalorder %v430, 64
      %vm439 = vcmp.lt.s32.totalorder %v431, 64
      %vm440 = vcmp.lt.s32.totalorder %v432, 64
      %v441 = vsel %vm433, 1, 0
      %v442 = vsel %vm434, 1, 0
      %v443 = vsel %vm435, 1, 0
      %v444 = vsel %vm436, 1, 0
      %v445 = vsel %vm437, 1, 0
      %v446 = vsel %vm438, 1, 0
      %v447 = vsel %vm439, 1, 0
      %v448 = vsel %vm440, 1, 0
      %vm449 = vcmp.eq.s32.totalorder %v441, 1
      %vm450 = vcmp.eq.s32.totalorder %v442, 1
      %vm451 = vcmp.eq.s32.totalorder %v443, 1
      %vm452 = vcmp.eq.s32.totalorder %v444, 1
      %vm453 = vcmp.eq.s32.totalorder %v445, 1
      %vm454 = vcmp.eq.s32.totalorder %v446, 1
      %vm455 = vcmp.eq.s32.totalorder %v447, 1
      %vm456 = vcmp.eq.s32.totalorder %v448, 1
      %v457 = vsel %vm449, %v406, 0.0
      %v458 = vsel %vm450, %v407, 0.0
      %v459 = vsel %vm451, %v408, 0.0
      %v460 = vsel %vm452, %v409, 0.0
      %v461 = vsel %vm453, %v410, 0.0
      %v462 = vsel %vm454, %v411, 0.0
      %v463 = vsel %vm455, %v412, 0.0
      %v464 = vsel %vm456, %v413, 0.0
      %v465 = vld [vmem:[#allocation2] sm:$0x1]
      %v466 = vadd.f32 %v457, %v458
      %v467 = vadd.f32 %v466, %v459
      %v468 = vadd.f32 %v467, %v460
      %v469 = vadd.f32 %v468, %v461
      %v470 = vadd.f32 %v469, %v462
      %v471 = vadd.f32 %v470, %v463
      %v472 = vadd.f32 %v471, %v464
      %v473 = vrot.slane %v472, 4
      %v474 = vadd.f32 %v472, %v473
      %v475 = vrot.slane %v474, 2
      %v476 = vadd.f32 %v474, %v475
      %v477 = vrot.slane %v476, 1
      %v478 = vadd.f32 %v476, %v477
      %v479 = vadd.f32 %v465, %v478
      %480 = vst [vmem:[#allocation2] sm:$0x1] %v479
      // Predicated region
      $region45: #{alpha_predictor.1} parent=39 // pred_check
        %p481 = pneg %p251
      $region46: #{alpha_predictor.1} parent=39 // pred_check_branch
        %483 = sbr.rel (%p481) target = $region48
      $region47: #{alpha_predictor.1} parent=39 // pred_region
        %v484 = vld [vmem:[#allocation2] sm:$0x1]
        %v485 = vmul.f32 %v484, 0.015625
        %v486 = vld [vmem:[%s3] sm:$0xff]
        %v487 = vld [vmem:[%s3 + $0x8] sm:$0xff]
        %v488 = vld [vmem:[%s3 + $0x10] sm:$0xff]
        %v489 = vld [vmem:[%s3 + $0x18] sm:$0xff]
        %v490 = vld [vmem:[%s3 + $0x20] sm:$0xff]
        %v491 = vld [vmem:[%s3 + $0x28] sm:$0xff]
        %v492 = vld [vmem:[%s3 + $0x30] sm:$0xff]
        %v493 = vld [vmem:[%s3 + $0x38] sm:$0xff]
        %v494 = vld [vmem:[%s3 + $0x40] sm:$0xff]
        %v495 = vld [vmem:[%s3 + $0x48] sm:$0xff]
        %v496 = vld [vmem:[%s3 + $0x50] sm:$0xff]
        %v497 = vld [vmem:[%s3 + $0x58] sm:$0xff]
        %v498 = vld [vmem:[%s3 + $0x60] sm:$0xff]
        %v499 = vld [vmem:[%s3 + $0x68] sm:$0xff]
        %v500 = vld [vmem:[%s3 + $0x70] sm:$0xff]
        %v501 = vld [vmem:[%s3 + $0x78] sm:$0xff]
        %v502 = vld [vmem:[%s4] sm:$0x1]
        %503 = vmatprep.subr.mxu0 0.0
        %504 = vmatpush1.msra.mxu0 %v486
        %505 = vmatprep.subr.mxu0 0.0
        %506 = vmatpush1.msra.mxu0 %v487
        %507 = vmatprep.subr.mxu0 0.0
        %508 = vmatpush1.msra.mxu0 %v488
        %509 = vmatprep.subr.mxu0 0.0
        %510 = vmatpush1.msra.mxu0 %v489
        %511 = vmatprep.subr.mxu0 0.0
        %512 = vmatpush1.msra.mxu0 %v490
        %513 = vmatprep.subr.mxu0 0.0
        %514 = vmatpush1.msra.mxu0 %v491
        %515 = vmatprep.subr.mxu0 0.0
        %516 = vmatpush1.msra.mxu0 %v492
        %517 = vmatprep.subr.mxu0 0.0
        %518 = vmatpush1.msra.mxu0 %v493
        %519 = vmatprep.subr.mxu0 0.0
        %520 = vmatpush1.msra.mxu0 %v494
        %521 = vmatprep.subr.mxu0 0.0
        %522 = vmatpush1.msra.mxu0 %v495
        %523 = vmatprep.subr.mxu0 0.0
        %524 = vmatpush1.msra.mxu0 %v496
        %525 = vmatprep.subr.mxu0 0.0
        %526 = vmatpush1.msra.mxu0 %v497
        %527 = vmatprep.subr.mxu0 0.0
        %528 = vmatpush1.msra.mxu0 %v498
        %529 = vmatprep.subr.mxu0 0.0
        %530 = vmatpush1.msra.mxu0 %v499
        %531 = vmatprep.subr.mxu0 0.0
        %532 = vmatpush1.msra.mxu0 %v500
        %533 = vmatprep.subr.mxu0 0.0
        %534 = vmatpush1.msra.mxu0 %v501
        %535 = vmatprep.subr.mxu0 0.0
        %536 = vmatpush1.msra.mxu0 0.0
        %537 = vmatprep.subr.mxu0 0.0
        %538 = vmatpush1.msra.mxu0 0.0
        %539 = vmatprep.subr.mxu0 0.0
        %540 = vmatpush1.msra.mxu0 0.0
        %541 = vmatprep.subr.mxu0 0.0
        %542 = vmatpush1.msra.mxu0 0.0
        %543 = vmatprep.subr.mxu0 0.0
        %544 = vmatpush1.msra.mxu0 0.0
        %545 = vmatprep.subr.mxu0 0.0
        %546 = vmatpush1.msra.mxu0 0.0
        %547 = vmatprep.subr.mxu0 0.0
        %548 = vmatpush1.msra.mxu0 0.0
        %549 = vmatprep.subr.mxu0 0.0
        %550 = vmatpush1.msra.mxu0 0.0
        %551 = vmatprep.subr.mxu0 0.0
        %552 = vmatpush1.msra.mxu0 0.0
        %553 = vmatprep.subr.mxu0 0.0
        %554 = vmatpush1.msra.mxu0 0.0
        %555 = vmatprep.subr.mxu0 0.0
        %556 = vmatpush1.msra.mxu0 0.0
        %557 = vmatprep.subr.mxu0 0.0
        %558 = vmatpush1.msra.mxu0 0.0
        %559 = vmatprep.subr.mxu0 0.0
        %560 = vmatpush1.msra.mxu0 0.0
        %561 = vmatprep.subr.mxu0 0.0
        %562 = vmatpush1.msra.mxu0 0.0
        %563 = vmatprep.subr.mxu0 0.0
        %564 = vmatpush1.msra.mxu0 0.0
        %565 = vmatprep.subr.mxu0 0.0
        %566 = vmatpush1.msra.mxu0 0.0
        %567 = vmatprep.mubr.f32.mxu0 0.0
        %568 = vmatmul.mubr.f32.gmra.mrb[0].mxu0 %v485
        %v569 = vpop.f32.mrb[0].mxu0
        %v570 = vadd.f32 %v502, %v569
        %v571 = vpop.f32.mrb[0].mxu0
        %572 = vdwg.mxu0
        %v573 = vsub.f32 0.0, %v570
        %v574 = vmul.f32 %v573, 1.442695
        %v575 = vpow.pop %v574
        %v576 = vadd.f32 %v575, 1.0
        %v577 = vrcp.pop %v576
        %v578 = vmul.f32 1.0, %v577
        %v579 = vlaneseq
        %v580 = vshrl.u32 %v579, 7
        %v581 = vsub.s32 0, %v580
        %v582 = vrot.slane %v578, %v581
        %583 = vst [vmem:[%s250] sm:$0xff] %v582
      $region48: #{alpha_predictor.1} parent=39 // pred_fallthru
        _
      %p584 = scmp.lt.s32.totalorder %s20, 1
      %s585 = scalar_select %p584, %s20, 1
      %s586 = smul.addr %s585, 8
      %s587 = scalar_lea.vmem %s5, %s586
      // Predicated region
      $region49: #{alpha_predictor.1} parent=39 // pred_check
        %p588 = pneg %p158
      $region50: #{alpha_predictor.1} parent=39 // pred_check_branch
        %590 = sbr.rel (%p588) target = $region52
      $region51: #{alpha_predictor.1} parent=39 // pred_region
        _
      $region52: #{alpha_predictor.1} parent=39 // pred_fallthru
        _
    $region40: #{alpha_predictor.1} parent=5 // pred_fallthru
      _
    %p591 = scmp.le.s32.totalorder 2, %s11
    // Predicated region
    $region53: #{alpha_predictor.1} parent=5 // pred_check
      %p592 = pneg %p591
    $region54: #{alpha_predictor.1} parent=5 // pred_check_branch
      %594 = sbr.rel (%p592) target = $region56
    $region55: #{alpha_predictor.1} parent=5 // pred_region
      %s595 = ssub.s32 %s11, 2
      // Predicated region
      $region57: #{alpha_predictor.1} parent=55 // pred_check
        %p596 = pneg %p164
      $region58: #{alpha_predictor.1} parent=55 // pred_check_branch
        %598 = sbr.rel (%p596) target = $region60
      $region59: #{alpha_predictor.1} parent=55 // pred_region
        %p599 = scmp.lt.s32.totalorder %s22, 1
        %s600 = scalar_select %p599, %s22, 1
        %s601 = smul.addr %s600, 8
        %s602 = scalar_lea.vmem %s5, %s601
      $region60: #{alpha_predictor.1} parent=55 // pred_fallthru
        _
    $region56: #{alpha_predictor.1} parent=5 // pred_fallthru
      _
  $region6: #{alpha_predictor.1} parent=0 // loop_footer
    %s15 = sadd.s32 1, %s11
  $region7: #{alpha_predictor.1} parent=0 // loop_footer_branch
    %10 = sbr.rel target = $region3
  $region8: #{alpha_predictor.1} parent=0 // loop_exit
    _

</llo_original>
